<compile_context>
chip_gen: v6e
topology: v6e:2x2x1
jax: 0.10.0
libtpu: 0.0.40
codegen_flags: <defaults>
</compile_context>

<pallas_src>
import math
import functools

import jax
import jax.numpy as jnp
from jax.experimental import pallas as pl
from jax.experimental.pallas import tpu as pltpu


def _round_up(x, m):
    return (x + m - 1) // m * m


def _fused_mlp_kernel(x_ref, w12_ref, b12_ref, w3_ref, b3_ref, o_ref, *, d_model):
    """One (pair, batch-tile) grid step of the fused SwiGLU MLP.

    x_ref  : (tb, D_in_pad)
    w12_ref: (D_in_pad, 2*d_model)   == [W1 | W2]
    b12_ref: (1, 2*d_model)          == [b1 | b2]
    w3_ref : (d_model, d_model)
    b3_ref : (1, d_model)
    o_ref  : (tb, d_model)
    """
    x = x_ref[...]

    # Single GEMM for both W1 and W2 (halves MXU pushes, doubles the N width).
    h12 = jnp.dot(x, w12_ref[...], preferred_element_type=jnp.float32) + b12_ref[...]
    x1 = h12[:, :d_model]
    x2 = h12[:, d_model:]

    # silu(x1) * x2  (sigmoid -> EUP slot, multiplies -> VPU)
    hidden = (x1 * jax.nn.sigmoid(x1)) * x2

    out = jnp.dot(hidden.astype(w3_ref.dtype), w3_ref[...],
                  preferred_element_type=jnp.float32) + b3_ref[...]
    o_ref[...] = out.astype(o_ref.dtype)


def embedding_forward(uvs, params, d_model, *, batch_tile=256):
    """uvs: list of (u, v) with u: (B, n), v: (B, m).  Returns (B, len(uvs), d_model)."""
    P = len(uvs)
    B = uvs[0][0].shape[0]
    dtype = uvs[0][0].dtype

    d_ins = [u.shape[1] + v.shape[1] for (u, v) in uvs]
    d_in_pad = _round_up(max(d_ins), 8)

    # Batch tiling: multiple-of-8 sublane tiles; a single tile for tiny batches.
    b_pad = _round_up(B, 8)
    tb = min(b_pad, batch_tile)
    b_pad = _round_up(b_pad, tb)
    nb = b_pad // tb

    # ---- Stack + zero-pad all pairs' inputs into one (P, B_pad, D_in_pad) slab ----
    xs = []
    for (u, v), d_in in zip(uvs, d_ins):
        uv = jnp.concatenate([u, v], axis=1).reshape(B, -1)        # flatten(start_dim=1)
        uv = jnp.pad(uv, ((0, b_pad - B), (0, d_in_pad - d_in)))
        xs.append(uv)
    x_stacked = jnp.stack(xs, axis=0)                              # (P, B_pad, D_in_pad)

    # ---- Stack weights: fuse W1|W2 and b1|b2; zero-pad W12 rows to D_in_pad ----
    w12s, b12s, w3s, b3s = [], [], [], []
    for (w1, b1, w2, b2, w3, b3), d_in in zip(params, d_ins):
        w12 = jnp.concatenate([w1, w2], axis=1)                    # (d_in, 2*d_model)
        w12 = jnp.pad(w12, ((0, d_in_pad - d_in), (0, 0)))
        w12s.append(w12)
        b12s.append(jnp.concatenate([b1, b2], axis=1))             # (1, 2*d_model)
        w3s.append(w3)
        b3s.append(b3)
    w12_stacked = jnp.stack(w12s, axis=0)                          # (P, D_in_pad, 2*dm)
    b12_stacked = jnp.stack(b12s, axis=0)                          # (P, 1, 2*dm)
    w3_stacked = jnp.stack(w3s, axis=0)                            # (P, dm, dm)
    b3_stacked = jnp.stack(b3s, axis=0)                            # (P, 1, dm)

    kernel = functools.partial(_fused_mlp_kernel, d_model=d_model)

    # Pair axis outer, batch axis inner -> per-pair weights stay VMEM-resident
    # across batch tiles (their index_maps ignore the batch index).
    out = pl.pallas_call(
        kernel,
        out_shape=jax.ShapeDtypeStruct((P, b_pad, d_model), dtype),
        grid=(P, nb),
        in_specs=[
            pl.BlockSpec((None, tb, d_in_pad), lambda p, b: (p, b, 0)),
            pl.BlockSpec((None, d_in_pad, 2 * d_model), lambda p, b: (p, 0, 0)),
            pl.BlockSpec((None, 1, 2 * d_model), lambda p, b: (p, 0, 0)),
            pl.BlockSpec((None, d_model, d_model), lambda p, b: (p, 0, 0)),
            pl.BlockSpec((None, 1, d_model), lambda p, b: (p, 0, 0)),
        ],
        out_specs=pl.BlockSpec((None, tb, d_model), lambda p, b: (p, b, 0)),
        compiler_params=pltpu.CompilerParams(
            dimension_semantics=("parallel", "parallel")),
    )(x_stacked, w12_stacked, b12_stacked, w3_stacked, b3_stacked)

    # (P, B_pad, d_model) -> (B, P, d_model): drop batch padding; pure layout plumbing.
    return jnp.transpose(out[:, :B, :], (1, 0, 2))


def init_linear(key, fan_in, fan_out, dtype=jnp.float32):
    """Deterministic init mimicking torch.nn.Linear (uniform +-1/sqrt(fan_in)).

    Weight is returned transposed: shape (fan_in, fan_out)."""
    kw, kb = jax.random.split(key)
    bound = 1.0 / math.sqrt(fan_in)
    w = jax.random.uniform(kw, (fan_in, fan_out), dtype, minval=-bound, maxval=bound)
    b = jax.random.uniform(kb, (1, fan_out), dtype, minval=-bound, maxval=bound)
    return w, b


def init_embedding_params(key, ns, ms, d_model):
    params = []
    for n, m in zip(ns, ms):
        key, k1, k2, k3 = jax.random.split(key, 4)
        w1, b1 = init_linear(k1, n + m, d_model)
        w2, b2 = init_linear(k2, n + m, d_model)
        w3, b3 = init_linear(k3, d_model, d_model)
        params.append((w1, b1, w2, b2, w3, b3))
    return params


def embedding_reference(uvs, params):
    """Pure-JAX reference for correctness checking."""
    outs = []
    for (u, v), (w1, b1, w2, b2, w3, b3) in zip(uvs, params):
        uv = jnp.concatenate([u, v], axis=1).reshape(u.shape[0], -1)
        x1 = uv @ w1 + b1
        x2 = uv @ w2 + b2
        hidden = jax.nn.silu(x1) * x2
        outs.append(hidden @ w3 + b3)
    return jnp.stack(outs, axis=1)


if __name__ == "__main__":
    # Small, deterministic config: two (n, m) pairs, d_model = 128, batch = 2.
    # d_model=128 keeps the output tile lane-dense (module default is d_model=1024).
    ns = (6, 10)
    ms = (2, 6)
    d_model = 128
    B = 2

    key = jax.random.PRNGKey(0)
    key, pkey = jax.random.split(key)
    params = init_embedding_params(pkey, ns, ms, d_model)

    uvs = []
    for n, m in zip(ns, ms):
        key, ku, kv = jax.random.split(key, 3)
        u = jax.random.normal(ku, (B, n), jnp.float32)
        v = jax.random.normal(kv, (B, m), jnp.float32)
        uvs.append((u, v))

    out = embedding_forward(uvs, params, d_model)
    out = jax.block_until_ready(out)

    ref = embedding_reference(uvs, params)
    assert out.shape == (B, len(ns), d_model), out.shape
    assert jnp.allclose(out, ref, atol=2e-5, rtol=2e-5), "mismatch vs. reference"

    print("KERNEL_OK")
</pallas_src>

<mosaic_0001>
module attributes {stable_mosaic.version = 11 : i64} {
  func.func @_fused_mlp_kernel(%arg0: i32, %arg1: i32, %arg2: memref<1x8x16xf32, #tpu.memory_space<vmem>>, %arg3: memref<1x16x256xf32, #tpu.memory_space<vmem>>, %arg4: memref<1x1x256xf32, #tpu.memory_space<vmem>>, %arg5: memref<1x128x128xf32, #tpu.memory_space<vmem>>, %arg6: memref<1x1x128xf32, #tpu.memory_space<vmem>>, %arg7: memref<1x8x128xf32, #tpu.memory_space<vmem>>) attributes {dimension_semantics = [#tpu.dimension_semantics<parallel>, #tpu.dimension_semantics<parallel>], iteration_bounds = array<i64: 2, 1>, scalar_prefetch = 0 : i64, scratch_operands = 0 : i64, tpu.core_type = #tpu.core_type<tc>, window_params = [{transform_indices = @transform_0, window_bounds = array<i64: 1, 8, 16>}, {transform_indices = @transform_1, window_bounds = array<i64: 1, 16, 256>}, {transform_indices = @transform_2, window_bounds = array<i64: 1, 1, 256>}, {transform_indices = @transform_3, window_bounds = array<i64: 1, 128, 128>}, {transform_indices = @transform_4, window_bounds = array<i64: 1, 1, 128>}, {transform_indices = @transform_5, window_bounds = array<i64: 1, 8, 128>}]} {
    %c0 = arith.constant 0 : index
    %c0_0 = arith.constant 0 : index
    %c0_1 = arith.constant 0 : index
    %0 = vector.load %arg2[%c0, %c0_0, %c0_1] : memref<1x8x16xf32, #tpu.memory_space<vmem>>, vector<1x8x16xf32>
    %1 = vector.shape_cast %0 : vector<1x8x16xf32> to vector<8x16xf32>
    %c0_2 = arith.constant 0 : index
    %c0_3 = arith.constant 0 : index
    %c0_4 = arith.constant 0 : index
    %2 = vector.load %arg3[%c0_2, %c0_3, %c0_4] : memref<1x16x256xf32, #tpu.memory_space<vmem>>, vector<1x16x256xf32>
    %3 = vector.shape_cast %2 : vector<1x16x256xf32> to vector<16x256xf32>
    %cst = arith.constant dense<0.000000e+00> : vector<8x256xf32>
    %4 = tpu.matmul %1, %3, %cst {dimension_numbers = #tpu.dot_dimension_numbers<[1], [0], [0], [1], [0, 0, 1, 1], [], []>} : vector<8x16xf32>, vector<16x256xf32>, vector<8x256xf32> -> vector<8x256xf32>
    %c0_5 = arith.constant 0 : index
    %c0_6 = arith.constant 0 : index
    %c0_7 = arith.constant 0 : index
    %5 = vector.load %arg4[%c0_5, %c0_6, %c0_7] : memref<1x1x256xf32, #tpu.memory_space<vmem>>, vector<1x1x256xf32>
    %6 = vector.shape_cast %5 : vector<1x1x256xf32> to vector<1x256xf32>
    %7 = vector.broadcast %6 : vector<1x256xf32> to vector<8x256xf32>
    %8 = arith.addf %4, %7 : vector<8x256xf32>
    %9 = vector.extract_strided_slice %8 {offsets = [0, 0], sizes = [8, 128], strides = [1, 1]} : vector<8x256xf32> to vector<8x128xf32>
    %10 = vector.extract_strided_slice %8 {offsets = [0, 128], sizes = [8, 128], strides = [1, 1]} : vector<8x256xf32> to vector<8x128xf32>
    %11 = arith.negf %9 : vector<8x128xf32>
    %12 = math.exp %11 : vector<8x128xf32>
    %cst_8 = arith.constant 1.000000e+00 : f32
    %13 = vector.broadcast %cst_8 : f32 to vector<8x128xf32>
    %14 = arith.addf %13, %12 : vector<8x128xf32>
    %15 = arith.divf %13, %14 : vector<8x128xf32>
    %16 = arith.mulf %9, %15 : vector<8x128xf32>
    %17 = arith.mulf %16, %10 : vector<8x128xf32>
    %c0_9 = arith.constant 0 : index
    %c0_10 = arith.constant 0 : index
    %c0_11 = arith.constant 0 : index
    %18 = vector.load %arg5[%c0_9, %c0_10, %c0_11] : memref<1x128x128xf32, #tpu.memory_space<vmem>>, vector<1x128x128xf32>
    %19 = vector.shape_cast %18 : vector<1x128x128xf32> to vector<128x128xf32>
    %cst_12 = arith.constant dense<0.000000e+00> : vector<8x128xf32>
    %20 = tpu.matmul %17, %19, %cst_12 {dimension_numbers = #tpu.dot_dimension_numbers<[1], [0], [0], [1], [0, 0, 1, 1], [], []>} : vector<8x128xf32>, vector<128x128xf32>, vector<8x128xf32> -> vector<8x128xf32>
    %c0_13 = arith.constant 0 : index
    %c0_14 = arith.constant 0 : index
    %c0_15 = arith.constant 0 : index
    %21 = vector.load %arg6[%c0_13, %c0_14, %c0_15] : memref<1x1x128xf32, #tpu.memory_space<vmem>>, vector<1x1x128xf32>
    %22 = vector.shape_cast %21 : vector<1x1x128xf32> to vector<1x128xf32>
    %23 = vector.broadcast %22 : vector<1x128xf32> to vector<8x128xf32>
    %24 = arith.addf %20, %23 : vector<8x128xf32>
    %c0_16 = arith.constant 0 : index
    %c0_17 = arith.constant 0 : index
    %c0_18 = arith.constant 0 : index
    %25 = vector.load %arg7[%c0_16, %c0_17, %c0_18] : memref<1x8x128xf32, #tpu.memory_space<vmem>>, vector<1x8x128xf32>
    %26 = vector.shape_cast %25 : vector<1x8x128xf32> to vector<8x128xf32>
    %27 = vector.shape_cast %24 : vector<8x128xf32> to vector<1x8x128xf32>
    tpu.vector_store %arg7[%c0_16, %c0_17, %c0_18], %27 {strides = array<i32>} : memref<1x8x128xf32, #tpu.memory_space<vmem>>, vector<1x8x128xf32>,
    return
  }
  func.func @transform_0(%arg0: i32, %arg1: i32) -> (i32, i32, i32) {
    %c0_i32 = arith.constant 0 : i32
    %c0_i32_0 = arith.constant 0 : i32
    return %arg0, %arg1, %c0_i32 : i32, i32, i32
  }
  func.func @transform_1(%arg0: i32, %arg1: i32) -> (i32, i32, i32) {
    %c0_i32 = arith.constant 0 : i32
    %c0_i32_0 = arith.constant 0 : i32
    %c0_i32_1 = arith.constant 0 : i32
    return %arg0, %c0_i32, %c0_i32_0 : i32, i32, i32
  }
  func.func @transform_2(%arg0: i32, %arg1: i32) -> (i32, i32, i32) {
    %c0_i32 = arith.constant 0 : i32
    %c0_i32_0 = arith.constant 0 : i32
    %c0_i32_1 = arith.constant 0 : i32
    return %arg0, %c0_i32, %c0_i32_0 : i32, i32, i32
  }
  func.func @transform_3(%arg0: i32, %arg1: i32) -> (i32, i32, i32) {
    %c0_i32 = arith.constant 0 : i32
    %c0_i32_0 = arith.constant 0 : i32
    %c0_i32_1 = arith.constant 0 : i32
    return %arg0, %c0_i32, %c0_i32_0 : i32, i32, i32
  }
  func.func @transform_4(%arg0: i32, %arg1: i32) -> (i32, i32, i32) {
    %c0_i32 = arith.constant 0 : i32
    %c0_i32_0 = arith.constant 0 : i32
    %c0_i32_1 = arith.constant 0 : i32
    return %arg0, %c0_i32, %c0_i32_0 : i32, i32, i32
  }
  func.func @transform_5(%arg0: i32, %arg1: i32) -> (i32, i32, i32) {
    %c0_i32 = arith.constant 0 : i32
    %c0_i32_0 = arith.constant 0 : i32
    return %arg0, %arg1, %c0_i32 : i32, i32, i32
  }
}

</mosaic_0001>

<llo_original>
// kernel: tpu_custom_call.1
$region0: #{tpu_custom_call.1}
  #allocation0 [shape = 'u32[]', space=smem, size = 0x4, offset = 0x4, fixed_abs, tag = 'smem constant byte address 0x4 - core index']
  #allocation1 [shape = 'u32[144,128]{1,0:T(1,128)}', space=vmem, size = 0x12000, scoped, tag = 'internal scratch']
  %s0 = inlined_call_operand.hbm [shape: f32[2,8,16], index: 0, kind: input, shape index: {}]
  %s1 = inlined_call_operand.hbm [shape: f32[2,16,256], index: 1, kind: input, shape index: {}]
  %s2 = inlined_call_operand.hbm [shape: f32[2,1,256], index: 2, kind: input, shape index: {}]
  %s3 = inlined_call_operand.hbm [shape: f32[2,128,128], index: 3, kind: input, shape index: {}]
  %s4 = inlined_call_operand.vmem [shape: f32[2,1,128], index: 4, kind: input, shape index: {}]
  %s5 = inlined_call_operand.hbm [shape: f32[2,8,128], index: 5, kind: output, shape index: {}]
  %s6 = sld [smem:[#allocation0]]
  $region69: #{tpu_custom_call.1} parent=0
    _
  %s8 = ssub.s32 1, %s6
  %s9 = scalar_select 0, %s8, %s6
  $region1: #{tpu_custom_call.1} parent=0
    #allocation2 [shape = 'u8[8192]{0}', space=vmem, size = 0x2000, scoped, tag = 'input window, operand 0']
    #allocation3 [shape = 's32[2]{0}', space=sflag, size = 0x8, scoped, tag = 'scoped memory for tpu_custom_call.1']
    #allocation4 [shape = 's32[2]{0}', space=sflag, size = 0x8, scoped, tag = 'scoped memory for tpu_custom_call.1']
    #allocation5 [shape = 'u8[32768]{0}', space=vmem, size = 0x8000, scoped, tag = 'input window, operand 1']
    #allocation6 [shape = 's32[2]{0}', space=sflag, size = 0x8, scoped, tag = 'scoped memory for tpu_custom_call.1']
    #allocation7 [shape = 'u8[2048]{0}', space=vmem, size = 0x800, scoped, tag = 'input window, operand 2']
    #allocation8 [shape = 'u8[131072]{0}', space=vmem, size = 0x20000, scoped, tag = 'input window, operand 3']
    #allocation9 [shape = 's32[2]{0}', space=sflag, size = 0x8, scoped, tag = 'scoped memory for tpu_custom_call.1']
    #allocation10 [shape = 'u8[8192]{0}', space=vmem, size = 0x2000, scoped, tag = 'output window, operand 0']
    %10 = vsyncpa [#allocation3], 0
    %s11 = scalar_lea.sflag [#allocation3], 1
    %12 = vsyncpa %s11, 0
    %13 = vsyncpa [#allocation6], 0
    %s14 = scalar_lea.sflag [#allocation6], 1
    %15 = vsyncpa %s14, 0
    %16 = vsyncpa [#allocation9], 0
    %s17 = scalar_lea.sflag [#allocation9], 1
    %18 = vsyncpa %s17, 0
    %19 = vsyncpa [#allocation4], 0
    %s20 = scalar_lea.sflag [#allocation4], 1
    %21 = vsyncpa %s20, 0
    loop: start=0, step=1, limit=4
    $region2: #{tpu_custom_call.1} parent=1 // loop_pre_header
      _
    $region3: #{tpu_custom_call.1} parent=1 // loop_header
      %s23 = sphi 0, %s27
      %p24 = scmp.ge.s32.totalorder %s23, 4
      %s30 = sphi 0, %s42
      %s31 = sphi 0, %s38
      %s32 = sphi 0, %s30
      %s33 = sphi 0, %s31
      %s34 = sphi 0, %s32
      %s35 = sphi 0, %s33
      %s47 = sphi 0, %s49
      %s50 = sphi 0, %s47
      %s51 = sphi 0, %s50
      %s67 = sphi 0, %s51
      %s73 = sphi 0, %s75
      %s76 = sphi 0, %s73
      %s77 = sphi 0, %s76
      %s93 = sphi 0, %s77
      %s99 = sphi 0, %s101
      %s102 = sphi 0, %s99
      %s103 = sphi 0, %s102
      %s119 = sphi 0, %s103
      %s125 = sphi 0, %s127
      %s128 = sphi 0, %s125
      %s129 = sphi 0, %s128
      %s145 = sphi 0, %s129
      %s151 = sphi 0, %s153
      %s154 = sphi 0, %s151
      %s155 = sphi 0, %s154
      %s171 = sphi 0, %s155
      %s179 = sphi 0, %s181
      %s182 = sphi 0, %s179
      %s183 = sphi 0, %s182
      %s199 = sphi 0, %s183
    $region4: #{tpu_custom_call.1} parent=1 // loop_header_branch
      %26 = sbr.rel (%p24) target = $region8
    $region5: #{tpu_custom_call.1} parent=1 // loop_body
      %s28 = ssub.s32 %s23, 1
      %s29 = ssub.s32 %s23, 2
      %s36 = sadd.s32 1, %s31
      %p37 = scmp.ge.s32.totalorder %s36, 1
      %s38 = scalar_select %p37, 0, %s36
      %s39 = sadd.s32 1, %s30
      %s40 = scalar_select %p37, %s39, %s30
      %p41 = scmp.ge.s32.totalorder %s40, 2
      %s42 = scalar_select %p41, 0, %s40
      %s43 = ssub.s32 %s30, %s42
      %s44 = ssub.s32 %s31, %s38
      %s45 = sor.u32 %s43, %s44
      %p46 = scmp.eq.s32.totalorder %s45, 0
      %s48 = sadd.s32 %s47, 1
      %s49 = scalar_select %p46, %s47, %s48
      %p52 = pneg %p46
      %p53 = scmp.eq.s32.totalorder %s23, 1
      %p54 = por %p52, %p53
      %p55 = scmp.ne.s32.totalorder %s47, %s50
      %p56 = scmp.eq.s32.totalorder %s23, 0
      %p57 = por %p55, %p56
      %p58 = scmp.ne.s32.totalorder %s47, %s50
      %p59 = scmp.eq.s32.totalorder %s28, 1
      %p60 = por %p58, %p59
      %p61 = scmp.ne.s32.totalorder %s50, %s51
      %p62 = scmp.eq.s32.totalorder %s28, 0
      %p63 = por %p61, %p62
      %p64 = scmp.ne.s32.totalorder %s50, %s51
      %p65 = scmp.eq.s32.totalorder %s29, 1
      %p66 = por %p64, %p65
      %p68 = scmp.ne.s32.totalorder %s51, %s67
      %p69 = scmp.eq.s32.totalorder %s29, 0
      %p70 = por %p68, %p69
      %s71 = ssub.s32 %s30, %s42
      %p72 = scmp.eq.s32.totalorder %s71, 0
      %s74 = sadd.s32 %s73, 1
      %s75 = scalar_select %p72, %s73, %s74
      %p78 = pneg %p72
      %p79 = scmp.eq.s32.totalorder %s23, 1
      %p80 = por %p78, %p79
      %p81 = scmp.ne.s32.totalorder %s73, %s76
      %p82 = scmp.eq.s32.totalorder %s23, 0
      %p83 = por %p81, %p82
      %p84 = scmp.ne.s32.totalorder %s73, %s76
      %p85 = scmp.eq.s32.totalorder %s28, 1
      %p86 = por %p84, %p85
      %p87 = scmp.ne.s32.totalorder %s76, %s77
      %p88 = scmp.eq.s32.totalorder %s28, 0
      %p89 = por %p87, %p88
      %p90 = scmp.ne.s32.totalorder %s76, %s77
      %p91 = scmp.eq.s32.totalorder %s29, 1
      %p92 = por %p90, %p91
      %p94 = scmp.ne.s32.totalorder %s77, %s93
      %p95 = scmp.eq.s32.totalorder %s29, 0
      %p96 = por %p94, %p95
      %s97 = ssub.s32 %s30, %s42
      %p98 = scmp.eq.s32.totalorder %s97, 0
      %s100 = sadd.s32 %s99, 1
      %s101 = scalar_select %p98, %s99, %s100
      %p104 = pneg %p98
      %p105 = scmp.eq.s32.totalorder %s23, 1
      %p106 = por %p104, %p105
      %p107 = scmp.ne.s32.totalorder %s99, %s102
      %p108 = scmp.eq.s32.totalorder %s23, 0
      %p109 = por %p107, %p108
      %p110 = scmp.ne.s32.totalorder %s99, %s102
      %p111 = scmp.eq.s32.totalorder %s28, 1
      %p112 = por %p110, %p111
      %p113 = scmp.ne.s32.totalorder %s102, %s103
      %p114 = scmp.eq.s32.totalorder %s28, 0
      %p115 = por %p113, %p114
      %p116 = scmp.ne.s32.totalorder %s102, %s103
      %p117 = scmp.eq.s32.totalorder %s29, 1
      %p118 = por %p116, %p117
      %p120 = scmp.ne.s32.totalorder %s103, %s119
      %p121 = scmp.eq.s32.totalorder %s29, 0
      %p122 = por %p120, %p121
      %s123 = ssub.s32 %s30, %s42
      %p124 = scmp.eq.s32.totalorder %s123, 0
      %s126 = sadd.s32 %s125, 1
      %s127 = scalar_select %p124, %s125, %s126
      %p130 = pneg %p124
      %p131 = scmp.eq.s32.totalorder %s23, 1
      %p132 = por %p130, %p131
      %p133 = scmp.ne.s32.totalorder %s125, %s128
      %p134 = scmp.eq.s32.totalorder %s23, 0
      %p135 = por %p133, %p134
      %p136 = scmp.ne.s32.totalorder %s125, %s128
      %p137 = scmp.eq.s32.totalorder %s28, 1
      %p138 = por %p136, %p137
      %p139 = scmp.ne.s32.totalorder %s128, %s129
      %p140 = scmp.eq.s32.totalorder %s28, 0
      %p141 = por %p139, %p140
      %p142 = scmp.ne.s32.totalorder %s128, %s129
      %p143 = scmp.eq.s32.totalorder %s29, 1
      %p144 = por %p142, %p143
      %p146 = scmp.ne.s32.totalorder %s129, %s145
      %p147 = scmp.eq.s32.totalorder %s29, 0
      %p148 = por %p146, %p147
      %s149 = ssub.s32 %s30, %s42
      %p150 = scmp.eq.s32.totalorder %s149, 0
      %s152 = sadd.s32 %s151, 1
      %s153 = scalar_select %p150, %s151, %s152
      %p156 = pneg %p150
      %p157 = scmp.eq.s32.totalorder %s23, 1
      %p158 = por %p156, %p157
      %p159 = scmp.ne.s32.totalorder %s151, %s154
      %p160 = scmp.eq.s32.totalorder %s23, 0
      %p161 = por %p159, %p160
      %p162 = scmp.ne.s32.totalorder %s151, %s154
      %p163 = scmp.eq.s32.totalorder %s28, 1
      %p164 = por %p162, %p163
      %p165 = scmp.ne.s32.totalorder %s154, %s155
      %p166 = scmp.eq.s32.totalorder %s28, 0
      %p167 = por %p165, %p166
      %p168 = scmp.ne.s32.totalorder %s154, %s155
      %p169 = scmp.eq.s32.totalorder %s29, 1
      %p170 = por %p168, %p169
      %p172 = scmp.ne.s32.totalorder %s155, %s171
      %p173 = scmp.eq.s32.totalorder %s29, 0
      %p174 = por %p172, %p173
      %s175 = ssub.s32 %s30, %s42
      %s176 = ssub.s32 %s31, %s38
      %s177 = sor.u32 %s175, %s176
      %p178 = scmp.eq.s32.totalorder %s177, 0
      %s180 = sadd.s32 %s179, 1
      %s181 = scalar_select %p178, %s179, %s180
      %p184 = pneg %p178
      %p185 = scmp.eq.s32.totalorder %s23, 1
      %p186 = por %p184, %p185
      %p187 = scmp.ne.s32.totalorder %s179, %s182
      %p188 = scmp.eq.s32.totalorder %s23, 0
      %p189 = por %p187, %p188
      %p190 = scmp.ne.s32.totalorder %s179, %s182
      %p191 = scmp.eq.s32.totalorder %s28, 1
      %p192 = por %p190, %p191
      %p193 = scmp.ne.s32.totalorder %s182, %s183
      %p194 = scmp.eq.s32.totalorder %s28, 0
      %p195 = por %p193, %p194
      %p196 = scmp.ne.s32.totalorder %s182, %s183
      %p197 = scmp.eq.s32.totalorder %s29, 1
      %p198 = por %p196, %p197
      %p200 = scmp.ne.s32.totalorder %s183, %s199
      %p201 = scmp.eq.s32.totalorder %s29, 0
      %p202 = por %p200, %p201
      %p203 = scmp.le.s32.totalorder 1, %s23
      %p204 = scmp.lt.s32.totalorder %s23, 3
      %p205 = pnand %p203, %p204
      %p206 = pneg %p205
      // Predicated region
      $region9: #{tpu_custom_call.1} parent=5 // pred_check
        _
      $region10: #{tpu_custom_call.1} parent=5 // pred_check_branch
        %208 = sbr.rel (%p205) target = $region12
      $region11: #{tpu_custom_call.1} parent=5 // pred_region
        %s209 = ssub.s32 %s23, 1
      $region12: #{tpu_custom_call.1} parent=5 // pred_fallthru
        _
      %p210 = scmp.lt.s32.totalorder %s23, 2
      // Predicated region
      $region13: #{tpu_custom_call.1} parent=5 // pred_check
        %p211 = pneg %p210
      $region14: #{tpu_custom_call.1} parent=5 // pred_check_branch
        %213 = sbr.rel (%p211) target = $region16
      $region15: #{tpu_custom_call.1} parent=5 // pred_region
        // Predicated region
        $region17: #{tpu_custom_call.1} parent=15 // pred_check
          %p214 = pneg %p57
        $region18: #{tpu_custom_call.1} parent=15 // pred_check_branch
          %216 = sbr.rel (%p214) target = $region20
        $region19: #{tpu_custom_call.1} parent=15 // pred_region
          %s217 = sand.u32 %s47, 1
          %s218 = scalar_lea.sflag [#allocation3], %s217
          %s219 = sand.u32 %s47, 1
          %s220 = smul.addr %s219, 8
          %s221 = scalar_lea.vmem [#allocation2], %s220
          %s223 = ssub.s32 128, 128
          %224 = vsyncadd %s218, %s223
          %s225 = sadd.s32 %s31, %s30
          %s226 = smul.addr %s225, 128
          %s227 = scalar_lea.hbm %s0, %s226
          %s229 = sshll.u32 %s221, 4
          %s230 = int_to_ptr.vmem [resolvable:$true] %s229
          %232 = dma.hbm_to_vmem [thread:$0]  %s227, 128, %s230, %s218
        $region20: #{tpu_custom_call.1} parent=15 // pred_fallthru
          _
        // Predicated region
        $region21: #{tpu_custom_call.1} parent=15 // pred_check
          %p233 = pneg %p83
        $region22: #{tpu_custom_call.1} parent=15 // pred_check_branch
          %235 = sbr.rel (%p233) target = $region24
        $region23: #{tpu_custom_call.1} parent=15 // pred_region
          %s236 = sand.u32 %s23, 1
          %s237 = scalar_lea.sflag [#allocation6], %s236
          %s238 = sand.u32 %s73, 1
          %s239 = smul.addr %s238, 32
          %s240 = scalar_lea.vmem [#allocation5], %s239
          %s242 = ssub.s32 512, 512
          %243 = vsyncadd %s237, %s242
          %s244 = smul.addr %s30, 4
          %s245 = smul.addr %s244, 128
          %s246 = scalar_lea.hbm %s1, %s245
          %s247 = sshll.u32 %s240, 4
          %s248 = int_to_ptr.vmem [resolvable:$true] %s247
          %253 = dma.hbm_to_vmem [thread:$0]  %s246, 512, %s248, %s237, 256, 256, 16
        $region24: #{tpu_custom_call.1} parent=15 // pred_fallthru
          _
        // Predicated region
        $region25: #{tpu_custom_call.1} parent=15 // pred_check
          %p254 = pneg %p109
        $region26: #{tpu_custom_call.1} parent=15 // pred_check_branch
          %256 = sbr.rel (%p254) target = $region28
        $region27: #{tpu_custom_call.1} parent=15 // pred_region
          %s257 = sand.u32 %s23, 1
          %s258 = scalar_lea.sflag [#allocation6], %s257
          %s259 = sand.u32 %s99, 1
          %s260 = smul.addr %s259, 2
          %s261 = scalar_lea.vmem [#allocation7], %s260
          %s263 = ssub.s32 32, 32
          %264 = vsyncadd %s258, %s263
          %s265 = smul.addr %s30, 2
          %s266 = smul.addr %s265, 16
          %s267 = scalar_lea.hbm %s2, %s266
          %s269 = sshll.u32 %s261, 4
          %s270 = int_to_ptr.vmem [resolvable:$true] %s269
          %272 = dma.hbm_to_vmem [thread:$0]  %s267, 32, %s270, %s258
        $region28: #{tpu_custom_call.1} parent=15 // pred_fallthru
          _
        // Predicated region
        $region29: #{tpu_custom_call.1} parent=15 // pred_check
          %p273 = pneg %p135
        $region30: #{tpu_custom_call.1} parent=15 // pred_check_branch
          %275 = sbr.rel (%p273) target = $region32
        $region31: #{tpu_custom_call.1} parent=15 // pred_region
          %s276 = sand.u32 %s125, 1
          %s277 = scalar_lea.sflag [#allocation9], %s276
          %s278 = sand.u32 %s125, 1
          %s279 = smul.addr %s278, 128
          %s280 = scalar_lea.vmem [#allocation8], %s279
          %s282 = ssub.s32 2048, 2048
          %283 = vsyncadd %s277, %s282
          %s284 = smul.addr %s30, 16
          %s285 = smul.addr %s284, 128
          %s286 = scalar_lea.hbm %s3, %s285
          %s287 = sshll.u32 %s280, 4
          %s288 = int_to_ptr.vmem [resolvable:$true] %s287
          %293 = dma.hbm_to_vmem [thread:$0]  %s286, 2048, %s288, %s277, 128, 128, 8
        $region32: #{tpu_custom_call.1} parent=15 // pred_fallthru
          _
        // Predicated region
        $region33: #{tpu_custom_call.1} parent=15 // pred_check
          %p294 = pneg %p161
        $region34: #{tpu_custom_call.1} parent=15 // pred_check_branch
          %296 = sbr.rel (%p294) target = $region36
        $region35: #{tpu_custom_call.1} parent=15 // pred_region
          %p297 = scmp.lt.s32.totalorder %s30, 1
          %s298 = scalar_select %p297, %s30, 1
          %s299 = scalar_lea.vmem %s4, %s298
        $region36: #{tpu_custom_call.1} parent=15 // pred_fallthru
          _
      $region16: #{tpu_custom_call.1} parent=5 // pred_fallthru
        _
      %p300 = scmp.le.s32.totalorder 1, %s23
      %p301 = scmp.lt.s32.totalorder %s23, 3
      %p302 = pnand %p300, %p301
      %p303 = pneg %p302
      // Predicated region
      $region37: #{tpu_custom_call.1} parent=5 // pred_check
        _
      $region38: #{tpu_custom_call.1} parent=5 // pred_check_branch
        %305 = sbr.rel (%p302) target = $region40
      $region39: #{tpu_custom_call.1} parent=5 // pred_region
        %s306 = ssub.s32 %s23, 1
        %s307 = sand.u32 %s50, 1
        %s308 = scalar_lea.sflag [#allocation3], %s307
        %s309 = sand.u32 %s50, 1
        %s310 = smul.addr %s309, 8
        %s311 = scalar_lea.vmem [#allocation2], %s310
        // Predicated region
        $region41: #{tpu_custom_call.1} parent=39 // pred_check
          %p312 = pneg %p63
        $region42: #{tpu_custom_call.1} parent=39 // pred_check_branch
          %314 = sbr.rel (%p312) target = $region44
        $region43: #{tpu_custom_call.1} parent=39 // pred_region
          %315 = dma.done %s308, 128
        $region44: #{tpu_custom_call.1} parent=39 // pred_fallthru
          _
        %s316 = sand.u32 %s28, 1
        %s317 = scalar_lea.sflag [#allocation6], %s316
        %s318 = sand.u32 %s76, 1
        %s319 = smul.addr %s318, 32
        %s320 = scalar_lea.vmem [#allocation5], %s319
        // Predicated region
        $region45: #{tpu_custom_call.1} parent=39 // pred_check
          %p321 = pneg %p89
        $region46: #{tpu_custom_call.1} parent=39 // pred_check_branch
          %323 = sbr.rel (%p321) target = $region48
        $region47: #{tpu_custom_call.1} parent=39 // pred_region
          %324 = dma.done %s317, 512
        $region48: #{tpu_custom_call.1} parent=39 // pred_fallthru
          _
        %s325 = sand.u32 %s28, 1
        %s326 = scalar_lea.sflag [#allocation6], %s325
        %s327 = sand.u32 %s102, 1
        %s328 = smul.addr %s327, 2
        %s329 = scalar_lea.vmem [#allocation7], %s328
        // Predicated region
        $region49: #{tpu_custom_call.1} parent=39 // pred_check
          %p330 = pneg %p115
        $region50: #{tpu_custom_call.1} parent=39 // pred_check_branch
          %332 = sbr.rel (%p330) target = $region52
        $region51: #{tpu_custom_call.1} parent=39 // pred_region
          %333 = dma.done %s326, 32
        $region52: #{tpu_custom_call.1} parent=39 // pred_fallthru
          _
        %s334 = sand.u32 %s128, 1
        %s335 = scalar_lea.sflag [#allocation9], %s334
        %s336 = sand.u32 %s128, 1
        %s337 = smul.addr %s336, 128
        %s338 = scalar_lea.vmem [#allocation8], %s337
        // Predicated region
        $region53: #{tpu_custom_call.1} parent=39 // pred_check
          %p339 = pneg %p141
        $region54: #{tpu_custom_call.1} parent=39 // pred_check_branch
          %341 = sbr.rel (%p339) target = $region56
        $region55: #{tpu_custom_call.1} parent=39 // pred_region
          %342 = dma.done %s335, 2048
        $region56: #{tpu_custom_call.1} parent=39 // pred_fallthru
          _
        %s343 = sand.u32 %s50, 1
        %s344 = scalar_lea.sflag [#allocation3], %s343
        %s345 = sand.u32 %s50, 1
        %s346 = smul.addr %s345, 8
        %s347 = scalar_lea.vmem [#allocation2], %s346
        %p348 = pneg %p63
        %p349 = pneg %p60
        %s350 = sand.u32 %s28, 1
        %s351 = scalar_lea.sflag [#allocation6], %s350
        %s352 = sand.u32 %s76, 1
        %s353 = smul.addr %s352, 32
        %s354 = scalar_lea.vmem [#allocation5], %s353
        %p355 = pneg %p89
        %p356 = pneg %p86
        %s357 = sand.u32 %s28, 1
        %s358 = scalar_lea.sflag [#allocation6], %s357
        %s359 = sand.u32 %s102, 1
        %s360 = smul.addr %s359, 2
        %s361 = scalar_lea.vmem [#allocation7], %s360
        %p362 = pneg %p115
        %p363 = pneg %p112
        %s364 = sand.u32 %s128, 1
        %s365 = scalar_lea.sflag [#allocation9], %s364
        %s366 = sand.u32 %s128, 1
        %s367 = smul.addr %s366, 128
        %s368 = scalar_lea.vmem [#allocation8], %s367
        %p369 = pneg %p141
        %p370 = pneg %p138
        %p371 = scmp.lt.s32.totalorder %s32, 1
        %s372 = scalar_select %p371, %s32, 1
        %s373 = scalar_lea.vmem %s4, %s372
        %p374 = pneg %p167
        %p375 = pneg %p164
        %p376 = pneg %p195
        %p377 = pneg %p192
        %s378 = sand.u32 %s182, 1
        %s379 = scalar_lea.sflag [#allocation4], %s378
        %s380 = sand.u32 %s182, 1
        %s381 = smul.addr %s380, 8
        %s382 = scalar_lea.vmem [#allocation10], %s381
        %p383 = scmp.lt.s32.totalorder %s32, 1
        %s384 = scalar_select %p383, %s32, 1
        %s385 = scalar_lea.vmem %s4, %s384
        %v386 = vld [vmem:[%s311] sm:$0xff]
        %v387 = vld [vmem:[%s320] sm:$0xff]
        %v388 = vld [vmem:[%s320 + $0x8] sm:$0xff]
        %v389 = vld [vmem:[%s320 + $0x10] sm:$0xff]
        %v390 = vld [vmem:[%s320 + $0x18] sm:$0xff]
        %v391 = vld [vmem:[%s329] sm:$0x3]
        %v393 = vlaneseq
        %v394 = vshrl.u32 %v393, 7
        %v395 = vsub.s32 0, %v394
        %v396 = vrot.slane %v391, %v395
        %v397 = vlaneseq
        %v398 = vshrl.u32 %v397, 7
        %v399 = vsub.s32 1, %v398
        %v400 = vrot.slane %v391, %v399
        %vm403 = vcmask 130048
        %v405 = vsel %vm403, %v386, 0
        %407 = vmatprep.subr.mxu0 0.0
        %408 = vmatpush1.msra.mxu0 0.0
        %409 = vmatprep.subr.mxu0 0.0
        %410 = vmatpush1.msra.mxu0 0.0
        %411 = vmatprep.subr.mxu0 0.0
        %412 = vmatpush1.msra.mxu0 0.0
        %413 = vmatprep.subr.mxu0 0.0
        %414 = vmatpush1.msra.mxu0 0.0
        %415 = vmatprep.subr.mxu0 0.0
        %416 = vmatpush1.msra.mxu0 0.0
        %417 = vmatprep.subr.mxu0 0.0
        %418 = vmatpush1.msra.mxu0 0.0
        %419 = vmatprep.subr.mxu0 0.0
        %420 = vmatpush1.msra.mxu0 0.0
        %421 = vmatprep.subr.mxu0 0.0
        %422 = vmatpush1.msra.mxu0 0.0
        %423 = vmatprep.subr.mxu0 0.0
        %424 = vmatpush1.msra.mxu0 0.0
        %425 = vmatprep.subr.mxu0 0.0
        %426 = vmatpush1.msra.mxu0 0.0
        %427 = vmatprep.subr.mxu0 0.0
        %428 = vmatpush1.msra.mxu0 0.0
        %429 = vmatprep.subr.mxu0 0.0
        %430 = vmatpush1.msra.mxu0 0.0
        %431 = vmatprep.subr.mxu0 0.0
        %432 = vmatpush1.msra.mxu0 0.0
        %433 = vmatprep.subr.mxu0 0.0
        %434 = vmatpush1.msra.mxu0 0.0
        %435 = vmatprep.subr.mxu0 %v390
        %436 = vmatpush1.msra.mxu0 %v389
        %437 = vmatprep.subr.mxu0 %v388
        %438 = vmatpush1.msra.mxu0 %v387
        %439 = vmatprep.subr.mxu0 0.0
        %440 = vmatpush2.msra.mxu0 0.0
        %441 = vmatprep.subr.mxu0 0.0
        %442 = vmatpush2.msra.mxu0 0.0
        %443 = vmatprep.subr.mxu0 0.0
        %444 = vmatpush2.msra.mxu0 0.0
        %445 = vmatprep.subr.mxu0 0.0
        %446 = vmatpush2.msra.mxu0 0.0
        %447 = vmatprep.subr.mxu0 0.0
        %448 = vmatpush2.msra.mxu0 0.0
        %449 = vmatprep.subr.mxu0 0.0
        %450 = vmatpush2.msra.mxu0 0.0
        %451 = vmatprep.subr.mxu0 0.0
        %452 = vmatpush2.msra.mxu0 0.0
        %453 = vmatprep.subr.mxu0 0.0
        %454 = vmatpush2.msra.mxu0 0.0
        %455 = vmatprep.subr.mxu0 0.0
        %456 = vmatpush2.msra.mxu0 0.0
        %457 = vmatprep.subr.mxu0 0.0
        %458 = vmatpush2.msra.mxu0 0.0
        %459 = vmatprep.subr.mxu0 0.0
        %460 = vmatpush2.msra.mxu0 0.0
        %461 = vmatprep.subr.mxu0 0.0
        %462 = vmatpush2.msra.mxu0 0.0
        %463 = vmatprep.subr.mxu0 0.0
        %464 = vmatpush2.msra.mxu0 0.0
        %465 = vmatprep.subr.mxu0 0.0
        %466 = vmatpush2.msra.mxu0 0.0
        %467 = vmatprep.subr.mxu0 0.0
        %468 = vmatpush2.msra.mxu0 0.0
        %469 = vmatprep.subr.mxu0 0.0
        %470 = vmatpush2.msra.mxu0 0.0
        %471 = vmatprep.mubr.f32.mxu0 0.0
        %472 = vmatmul.mubr.f32.gmra.mxu0 %v405
        %v473 = vpop.f32.mrf.mxu0
        %v474 = vadd.f32 %v396, %v473
        %v475 = vpop.f32.mrf.mxu0
        %v476 = vadd.f32 %v400, %v475
        %477 = vdwg.mxu0
        %v478 = vxor.u32 %v474, 2147483648
        %v479 = vmul.f32 %v478, 1.442695
        %v480 = vpow.pop %v479
        %v481 = vadd.f32 %v480, 1.0
        %v482 = vrcp.pop %v481
        %v483 = vmul.f32 1.0, %v482
        %v484 = vmul.f32 %v474, %v483
        %v485 = vmul.f32 %v484, %v476
        %v486 = vld [vmem:[%s338] sm:$0xff]
        %v487 = vld [vmem:[%s338 + $0x8] sm:$0xff]
        %v488 = vld [vmem:[%s338 + $0x10] sm:$0xff]
        %v489 = vld [vmem:[%s338 + $0x18] sm:$0xff]
        %v490 = vld [vmem:[%s338 + $0x20] sm:$0xff]
        %v491 = vld [vmem:[%s338 + $0x28] sm:$0xff]
        %v492 = vld [vmem:[%s338 + $0x30] sm:$0xff]
        %v493 = vld [vmem:[%s338 + $0x38] sm:$0xff]
        %v494 = vld [vmem:[%s338 + $0x40] sm:$0xff]
        %v495 = vld [vmem:[%s338 + $0x48] sm:$0xff]
        %v496 = vld [vmem:[%s338 + $0x50] sm:$0xff]
        %v497 = vld [vmem:[%s338 + $0x58] sm:$0xff]
        %v498 = vld [vmem:[%s338 + $0x60] sm:$0xff]
        %v499 = vld [vmem:[%s338 + $0x68] sm:$0xff]
        %v500 = vld [vmem:[%s338 + $0x70] sm:$0xff]
        %v501 = vld [vmem:[%s338 + $0x78] sm:$0xff]
        %v502 = vld [vmem:[%s385] sm:$0x1]
        %v504 = vlaneseq
        %v505 = vshrl.u32 %v504, 7
        %v506 = vsub.s32 0, %v505
        %v507 = vrot.slane %v502, %v506
        %509 = vmatprep.subr.mxu0 0.0
        %510 = vmatpush1.msra.mxu0 %v501
        %511 = vmatprep.subr.mxu0 0.0
        %512 = vmatpush1.msra.mxu0 %v500
        %513 = vmatprep.subr.mxu0 0.0
        %514 = vmatpush1.msra.mxu0 %v499
        %515 = vmatprep.subr.mxu0 0.0
        %516 = vmatpush1.msra.mxu0 %v498
        %517 = vmatprep.subr.mxu0 0.0
        %518 = vmatpush1.msra.mxu0 %v497
        %519 = vmatprep.subr.mxu0 0.0
        %520 = vmatpush1.msra.mxu0 %v496
        %521 = vmatprep.subr.mxu0 0.0
        %522 = vmatpush1.msra.mxu0 %v495
        %523 = vmatprep.subr.mxu0 0.0
        %524 = vmatpush1.msra.mxu0 %v494
        %525 = vmatprep.subr.mxu0 0.0
        %526 = vmatpush1.msra.mxu0 %v493
        %527 = vmatprep.subr.mxu0 0.0
        %528 = vmatpush1.msra.mxu0 %v492
        %529 = vmatprep.subr.mxu0 0.0
        %530 = vmatpush1.msra.mxu0 %v491
        %531 = vmatprep.subr.mxu0 0.0
        %532 = vmatpush1.msra.mxu0 %v490
        %533 = vmatprep.subr.mxu0 0.0
        %534 = vmatpush1.msra.mxu0 %v489
        %535 = vmatprep.subr.mxu0 0.0
        %536 = vmatpush1.msra.mxu0 %v488
        %537 = vmatprep.subr.mxu0 0.0
        %538 = vmatpush1.msra.mxu0 %v487
        %539 = vmatprep.subr.mxu0 0.0
        %540 = vmatpush1.msra.mxu0 %v486
        %541 = vmatprep.subr.mxu0 0.0
        %542 = vmatpush2.msra.mxu0 0.0
        %543 = vmatprep.subr.mxu0 0.0
        %544 = vmatpush2.msra.mxu0 0.0
        %545 = vmatprep.subr.mxu0 0.0
        %546 = vmatpush2.msra.mxu0 0.0
        %547 = vmatprep.subr.mxu0 0.0
        %548 = vmatpush2.msra.mxu0 0.0
        %549 = vmatprep.subr.mxu0 0.0
        %550 = vmatpush2.msra.mxu0 0.0
        %551 = vmatprep.subr.mxu0 0.0
        %552 = vmatpush2.msra.mxu0 0.0
        %553 = vmatprep.subr.mxu0 0.0
        %554 = vmatpush2.msra.mxu0 0.0
        %555 = vmatprep.subr.mxu0 0.0
        %556 = vmatpush2.msra.mxu0 0.0
        %557 = vmatprep.subr.mxu0 0.0
        %558 = vmatpush2.msra.mxu0 0.0
        %559 = vmatprep.subr.mxu0 0.0
        %560 = vmatpush2.msra.mxu0 0.0
        %561 = vmatprep.subr.mxu0 0.0
        %562 = vmatpush2.msra.mxu0 0.0
        %563 = vmatprep.subr.mxu0 0.0
        %564 = vmatpush2.msra.mxu0 0.0
        %565 = vmatprep.subr.mxu0 0.0
        %566 = vmatpush2.msra.mxu0 0.0
        %567 = vmatprep.subr.mxu0 0.0
        %568 = vmatpush2.msra.mxu0 0.0
        %569 = vmatprep.subr.mxu0 0.0
        %570 = vmatpush2.msra.mxu0 0.0
        %571 = vmatprep.subr.mxu0 0.0
        %572 = vmatpush2.msra.mxu0 0.0
        %573 = vmatprep.mubr.f32.mxu0 0.0
        %574 = vmatmul.mubr.f32.gmra.mxu0 %v485
        %v575 = vpop.f32.mrf.mxu0
        %v576 = vadd.f32 %v507, %v575
        %v577 = vpop.f32.mrf.mxu0
        %578 = vdwg.mxu0
        %579 = vst [vmem:[%s382] sm:$0xff] %v576
        %s580 = sand.u32 %s182, 1
        %s581 = scalar_lea.sflag [#allocation4], %s580
        %s582 = sand.u32 %s182, 1
        %s583 = smul.addr %s582, 8
        %s584 = scalar_lea.vmem [#allocation10], %s583
        // Predicated region
        $region57: #{tpu_custom_call.1} parent=39 // pred_check
          %p585 = pneg %p192
        $region58: #{tpu_custom_call.1} parent=39 // pred_check_branch
          %587 = sbr.rel (%p585) target = $region60
        $region59: #{tpu_custom_call.1} parent=39 // pred_region
          %s589 = ssub.s32 128, 128
          %590 = vsyncadd %s581, %s589
          %s591 = sadd.s32 %s33, %s32
          %s592 = smul.addr %s591, 128
          %s593 = scalar_lea.hbm %s5, %s592
          %s595 = sshll.u32 %s584, 4
          %s596 = int_to_ptr.vmem [resolvable:$true] %s595
          %598 = dma.vmem_to_hbm [thread:$0]  %s596, 128, %s593, %s581
        $region60: #{tpu_custom_call.1} parent=39 // pred_fallthru
          _
      $region40: #{tpu_custom_call.1} parent=5 // pred_fallthru
        _
      %p599 = scmp.le.s32.totalorder 2, %s23
      // Predicated region
      $region61: #{tpu_custom_call.1} parent=5 // pred_check
        %p600 = pneg %p599
      $region62: #{tpu_custom_call.1} parent=5 // pred_check_branch
        %602 = sbr.rel (%p600) target = $region64
      $region63: #{tpu_custom_call.1} parent=5 // pred_region
        %s603 = ssub.s32 %s23, 2
        // Predicated region
        $region65: #{tpu_custom_call.1} parent=63 // pred_check
          %p604 = pneg %p198
        $region66: #{tpu_custom_call.1} parent=63 // pred_check_branch
          %606 = sbr.rel (%p604) target = $region68
        $region67: #{tpu_custom_call.1} parent=63 // pred_region
          %s607 = sand.u32 %s183, 1
          %s608 = scalar_lea.sflag [#allocation4], %s607
          %s609 = sand.u32 %s183, 1
          %s610 = smul.addr %s609, 8
          %s611 = scalar_lea.vmem [#allocation10], %s610
          %612 = dma.done %s608, 128
        $region68: #{tpu_custom_call.1} parent=63 // pred_fallthru
          _
      $region64: #{tpu_custom_call.1} parent=5 // pred_fallthru
        _
    $region6: #{tpu_custom_call.1} parent=1 // loop_footer
      %s27 = sadd.s32 1, %s23
    $region7: #{tpu_custom_call.1} parent=1 // loop_footer_branch
      %22 = sbr.rel target = $region3
    $region8: #{tpu_custom_call.1} parent=1 // loop_exit
      _
    %613 = vsyncpa [#allocation3], 1
    %s614 = scalar_lea.sflag [#allocation3], 1
    %615 = vsyncpa %s614, 1
    %616 = vsyncpa [#allocation6], 1
    %s617 = scalar_lea.sflag [#allocation6], 1
    %618 = vsyncpa %s617, 1
    %619 = vsyncpa [#allocation9], 1
    %s620 = scalar_lea.sflag [#allocation9], 1
    %621 = vsyncpa %s620, 1
    %622 = vsyncpa [#allocation4], 1
    %s623 = scalar_lea.sflag [#allocation4], 1
    %624 = vsyncpa %s623, 1

</llo_original>
